<compile_context>
chip_gen: v5e
topology: v5e:2x2
jax: 0.10.0
libtpu: 0.0.40
codegen_flags: <defaults>
</compile_context>

<pallas_src>
import jax
import jax.numpy as jnp
from jax.experimental import pallas as pl
from jax.experimental.pallas import tpu as pltpu

F_IN = 28 * 28     # 784
LAT = 3            # latent width


def _autoencoder_kernel(
    x_ref,                 # (TB, 784)  input tile (f32 stream)
    w1_ref, b1_ref,        # 784 -> 128
    w2_ref, b2_ref,        # 128 -> 32
    w3_ref, b3_ref,        # 32  -> 3   (latent head)
    w34_ref, b34_ref,      # 32  -> 32  (fused 32->3->32 decoder entry)
    w5_ref, b5_ref,        # 32  -> 128
    w6_ref, b6_ref,        # 128 -> 784
    enc_ref, dec_ref,      # (TB, 3) f32, (TB, 784) f32
):
    cd = w1_ref.dtype  # compute dtype for MXU inputs (f32 or bf16); accum is f32
    x = x_ref[...].astype(cd)

    # ---- encoder: 784 -> 128 -> 32 (tanh) ----
    h1 = jnp.tanh(
        jnp.dot(x, w1_ref[...], preferred_element_type=jnp.float32) + b1_ref[...]
    )
    h2 = jnp.tanh(
        jnp.dot(h1.astype(cd), w2_ref[...], preferred_element_type=jnp.float32)
        + b2_ref[...]
    )
    h2c = h2.astype(cd)

    # ---- latent: written directly at its final (TB, 3) shape ----
    enc_ref[...] = (
        jnp.dot(h2c, w3_ref[...], preferred_element_type=jnp.float32) + b3_ref[...]
    ).astype(enc_ref.dtype)

    # ---- decoder ----
    # First two layers fused EXACTLY (no activation on the latent in the spec):
    #   (h2 @ w3 + b3) @ w4 + b4 == h2 @ (w3 @ w4) + (b3 @ w4 + b4)
    d1 = jnp.tanh(
        jnp.dot(h2c, w34_ref[...], preferred_element_type=jnp.float32) + b34_ref[...]
    )
    d2 = jnp.tanh(
        jnp.dot(d1.astype(cd), w5_ref[...], preferred_element_type=jnp.float32)
        + b5_ref[...]
    )
    logits = (
        jnp.dot(d2.astype(cd), w6_ref[...], preferred_element_type=jnp.float32)
        + b6_ref[...]
    )
    # sigmoid(z) = 0.5 * (tanh(z/2) + 1) -> single EUP op instead of a VPU divide
    dec_ref[...] = (0.5 * (jnp.tanh(0.5 * logits) + 1.0)).astype(dec_ref.dtype)


def _round_up(n, m):
    return ((n + m - 1) // m) * m


def _prepare_params(params, compute_dtype):
    """Fuse the 3-wide bottleneck and cast weights to the compute dtype."""
    w1, b1, w2, b2, w3, b3, w4, b4, w5, b5, w6, b6 = params

    # Exact fusion of the K=3/N=3 decoder entry. NOTE: this identity holds only
    # because the reference applies NO nonlinearity on the latent output; if an
    # activation is ever added on `enc`, this fusion must be removed.
    w34 = w3 @ w4            # (32, 32)
    b34 = b3 @ w4 + b4       # (1, 32)

    cd = compute_dtype
    # Weights in compute dtype (bf16 is MXU-native on v5e/v6e/v7x and halves the
    # resident VMEM); biases stay f32 (added to f32 accumulators).
    return [
        w1.astype(cd), b1,
        w2.astype(cd), b2,
        w3.astype(cd), b3,
        w34.astype(cd), b34,
        w5.astype(cd), b5,
        w6.astype(cd), b6,
    ]


def autoencoder_forward(x, params, *, tb=512, compute_dtype=jnp.float32):
    """x: [B, 784] float32; params: flat list [w1,b1,...,w6,b6] with weights in
    [in, out] layout and biases [1, out].  Returns (encode [B,3], decode [B,784])
    as float32.

    tb: batch tile upper bound.  512 keeps the f32 working set (~10 MiB) inside
    even v5e's 16 MiB default scoped VMEM; raise vmem_limit_bytes before going
    much larger.  When B fits in a single tile but is >= 16 rows, the batch is
    split into two tiles so both v7x TensorCores get work.
    """
    B, F = x.shape
    assert F == F_IN

    prep = _prepare_params(params, compute_dtype)

    tb = int(tb)
    assert tb % 8 == 0
    if B % 16 == 0 and (B // 2) <= tb:
        TB = B // 2          # >=2 tiles (v7x megacore) with zero batch padding
    elif B <= tb:
        TB = B               # single full-extent tile (no 8-divisibility needed)
    else:
        TB = tb
    B_pad = _round_up(B, TB)

    # Only copy x if the batch tail needs zero-padding (no feature padding, no cast).
    x_in = x if B_pad == B else jnp.zeros((B_pad, F_IN), x.dtype).at[:B].set(x)

    grid = (B_pad // TB,)

    in_specs = [pl.BlockSpec((TB, F_IN), lambda i: (i, 0))] + [
        # Resident parameters: full-shape blocks, constant index map -> DMA'd once.
        pl.BlockSpec(p.shape, lambda i: (0, 0)) for p in prep
    ]
    out_specs = (
        pl.BlockSpec((TB, LAT), lambda i: (i, 0)),
        pl.BlockSpec((TB, F_IN), lambda i: (i, 0)),
    )

    enc, dec = pl.pallas_call(
        _autoencoder_kernel,
        out_shape=(
            jax.ShapeDtypeStruct((B_pad, LAT), jnp.float32),
            jax.ShapeDtypeStruct((B_pad, F_IN), jnp.float32),
        ),
        grid=grid,
        in_specs=in_specs,
        out_specs=out_specs,
        compiler_params=pltpu.CompilerParams(
            dimension_semantics=("parallel",),   # shard batch tiles over v7x's 2 TCs
        ),
    )(x_in, *prep)

    if B_pad != B:
        enc = enc[:B]
        dec = dec[:B]
    return enc, dec


def init_params(key):
    """Deterministic init matching PyTorch Linear shapes.

    nn.Linear(in, out): weight [out, in], bias [out], both U(-1/sqrt(in), 1/sqrt(in)).
    We store the weight transposed as [in, out] and the bias as [1, out].
    """
    layer_dims = [
        (F_IN, 128), (128, 32), (32, 3),       # encoder
        (3, 32), (32, 128), (128, F_IN),       # decoder
    ]
    params = []
    for (fan_in, fan_out) in layer_dims:
        key, kw, kb = jax.random.split(key, 3)
        bound = 1.0 / jnp.sqrt(float(fan_in))
        w = jax.random.uniform(kw, (fan_in, fan_out), jnp.float32, -bound, bound)
        b = jax.random.uniform(kb, (1, fan_out), jnp.float32, -bound, bound)
        params += [w, b]
    return params


def reference_forward(x, params):
    """Pure-JAX reference (matches the PyTorch module exactly)."""
    w1, b1, w2, b2, w3, b3, w4, b4, w5, b5, w6, b6 = params
    h = jnp.tanh(x @ w1 + b1)
    h = jnp.tanh(h @ w2 + b2)
    enc = h @ w3 + b3
    d = jnp.tanh(enc @ w4 + b4)
    d = jnp.tanh(d @ w5 + b5)
    dec = jax.nn.sigmoid(d @ w6 + b6)
    return enc, dec


if __name__ == "__main__":
    key = jax.random.PRNGKey(0)
    key, kx, kx2 = jax.random.split(key, 3)
    params = init_params(key)

    # --- f32 path, single tile ---
    B = 8
    x = jax.random.uniform(kx, (B, F_IN), jnp.float32)  # MNIST-like flat input
    enc_ref, dec_ref = reference_forward(x, params)

    enc, dec = autoencoder_forward(x, params, compute_dtype=jnp.float32)
    jax.block_until_ready((enc, dec))
    assert enc.shape == (B, LAT) and dec.shape == (B, F_IN)
    assert enc.dtype == jnp.float32 and dec.dtype == jnp.float32
    assert jnp.allclose(enc, enc_ref, atol=1e-4, rtol=1e-4)
    assert jnp.allclose(dec, dec_ref, atol=1e-4, rtol=1e-4)

    # --- f32 path, multi-tile grid + batch-tail padding ---
    B2 = 20
    x2 = jax.random.uniform(kx2, (B2, F_IN), jnp.float32)
    enc2_ref, dec2_ref = reference_forward(x2, params)
    enc2, dec2 = autoencoder_forward(x2, params, tb=8, compute_dtype=jnp.float32)
    jax.block_until_ready((enc2, dec2))
    assert enc2.shape == (B2, LAT) and dec2.shape == (B2, F_IN)
    assert jnp.allclose(enc2, enc2_ref, atol=1e-4, rtol=1e-4)
    assert jnp.allclose(dec2, dec2_ref, atol=1e-4, rtol=1e-4)

    # --- bf16 weight/compute path (f32 x/dec streams, f32 accumulation) ---
    enc_bf, dec_bf = autoencoder_forward(x, params, compute_dtype=jnp.bfloat16)
    jax.block_until_ready((enc_bf, dec_bf))
    assert enc_bf.shape == (B, LAT) and dec_bf.shape == (B, F_IN)
    assert jnp.allclose(enc_bf, enc_ref, atol=7e-2, rtol=7e-2)
    assert jnp.allclose(dec_bf, dec_ref, atol=2e-2, rtol=2e-2)

    print("KERNEL_OK")
</pallas_src>

<mosaic_0001>
module attributes {stable_mosaic.version = 11 : i64} {
  func.func @_autoencoder_kernel(%arg0: i32, %arg1: memref<8x784xf32, #tpu.memory_space<vmem>>, %arg2: memref<784x128xf32, #tpu.memory_space<vmem>>, %arg3: memref<1x128xf32, #tpu.memory_space<vmem>>, %arg4: memref<128x32xf32, #tpu.memory_space<vmem>>, %arg5: memref<1x32xf32, #tpu.memory_space<vmem>>, %arg6: memref<32x3xf32, #tpu.memory_space<vmem>>, %arg7: memref<1x3xf32, #tpu.memory_space<vmem>>, %arg8: memref<32x32xf32, #tpu.memory_space<vmem>>, %arg9: memref<1x32xf32, #tpu.memory_space<vmem>>, %arg10: memref<32x128xf32, #tpu.memory_space<vmem>>, %arg11: memref<1x128xf32, #tpu.memory_space<vmem>>, %arg12: memref<128x784xf32, #tpu.memory_space<vmem>>, %arg13: memref<1x784xf32, #tpu.memory_space<vmem>>, %arg14: memref<8x3xf32, #tpu.memory_space<vmem>>, %arg15: memref<8x784xf32, #tpu.memory_space<vmem>>) attributes {dimension_semantics = [#tpu.dimension_semantics<parallel>], iteration_bounds = array<i64: 1>, scalar_prefetch = 0 : i64, scratch_operands = 0 : i64, tpu.core_type = #tpu.core_type<tc>, window_params = [{transform_indices = @transform_0, window_bounds = array<i64: 8, 784>}, {pipeline_mode = #tpu.pipeline_mode<synchronous>, transform_indices = @transform_1, window_bounds = array<i64: 784, 128>}, {pipeline_mode = #tpu.pipeline_mode<synchronous>, transform_indices = @transform_2, window_bounds = array<i64: 1, 128>}, {pipeline_mode = #tpu.pipeline_mode<synchronous>, transform_indices = @transform_3, window_bounds = array<i64: 128, 32>}, {pipeline_mode = #tpu.pipeline_mode<synchronous>, transform_indices = @transform_4, window_bounds = array<i64: 1, 32>}, {pipeline_mode = #tpu.pipeline_mode<synchronous>, transform_indices = @transform_5, window_bounds = array<i64: 32, 3>}, {pipeline_mode = #tpu.pipeline_mode<synchronous>, transform_indices = @transform_6, window_bounds = array<i64: 1, 3>}, {pipeline_mode = #tpu.pipeline_mode<synchronous>, transform_indices = @transform_7, window_bounds = array<i64: 32, 32>}, {pipeline_mode = #tpu.pipeline_mode<synchronous>, transform_indices = @transform_8, window_bounds = array<i64: 1, 32>}, {pipeline_mode = #tpu.pipeline_mode<synchronous>, transform_indices = @transform_9, window_bounds = array<i64: 32, 128>}, {pipeline_mode = #tpu.pipeline_mode<synchronous>, transform_indices = @transform_10, window_bounds = array<i64: 1, 128>}, {pipeline_mode = #tpu.pipeline_mode<synchronous>, transform_indices = @transform_11, window_bounds = array<i64: 128, 784>}, {pipeline_mode = #tpu.pipeline_mode<synchronous>, transform_indices = @transform_12, window_bounds = array<i64: 1, 784>}, {transform_indices = @transform_13, window_bounds = array<i64: 8, 3>}, {transform_indices = @transform_14, window_bounds = array<i64: 8, 784>}]} {
    %c0 = arith.constant 0 : index
    %c0_0 = arith.constant 0 : index
    %0 = vector.load %arg1[%c0, %c0_0] : memref<8x784xf32, #tpu.memory_space<vmem>>, vector<8x784xf32>
    %c0_1 = arith.constant 0 : index
    %c0_2 = arith.constant 0 : index
    %1 = vector.load %arg2[%c0_1, %c0_2] : memref<784x128xf32, #tpu.memory_space<vmem>>, vector<784x128xf32>
    %cst = arith.constant dense<0.000000e+00> : vector<8x128xf32>
    %2 = tpu.matmul %0, %1, %cst {dimension_numbers = #tpu.dot_dimension_numbers<[1], [0], [0], [1], [0, 0, 1, 1], [], []>} : vector<8x784xf32>, vector<784x128xf32>, vector<8x128xf32> -> vector<8x128xf32>
    %c0_3 = arith.constant 0 : index
    %c0_4 = arith.constant 0 : index
    %3 = vector.load %arg3[%c0_3, %c0_4] : memref<1x128xf32, #tpu.memory_space<vmem>>, vector<1x128xf32>
    %4 = vector.broadcast %3 : vector<1x128xf32> to vector<8x128xf32>
    %5 = arith.addf %2, %4 : vector<8x128xf32>
    %6 = math.tanh %5 : vector<8x128xf32>
    %c0_5 = arith.constant 0 : index
    %c0_6 = arith.constant 0 : index
    %7 = vector.load %arg4[%c0_5, %c0_6] : memref<128x32xf32, #tpu.memory_space<vmem>>, vector<128x32xf32>
    %cst_7 = arith.constant dense<0.000000e+00> : vector<8x32xf32>
    %8 = tpu.matmul %6, %7, %cst_7 {dimension_numbers = #tpu.dot_dimension_numbers<[1], [0], [0], [1], [0, 0, 1, 1], [], []>} : vector<8x128xf32>, vector<128x32xf32>, vector<8x32xf32> -> vector<8x32xf32>
    %c0_8 = arith.constant 0 : index
    %c0_9 = arith.constant 0 : index
    %9 = vector.load %arg5[%c0_8, %c0_9] : memref<1x32xf32, #tpu.memory_space<vmem>>, vector<1x32xf32>
    %10 = vector.broadcast %9 : vector<1x32xf32> to vector<8x32xf32>
    %11 = arith.addf %8, %10 : vector<8x32xf32>
    %12 = math.tanh %11 : vector<8x32xf32>
    %c0_10 = arith.constant 0 : index
    %c0_11 = arith.constant 0 : index
    %13 = vector.load %arg6[%c0_10, %c0_11] : memref<32x3xf32, #tpu.memory_space<vmem>>, vector<32x3xf32>
    %cst_12 = arith.constant dense<0.000000e+00> : vector<8x3xf32>
    %14 = tpu.matmul %12, %13, %cst_12 {dimension_numbers = #tpu.dot_dimension_numbers<[1], [0], [0], [1], [0, 0, 1, 1], [], []>} : vector<8x32xf32>, vector<32x3xf32>, vector<8x3xf32> -> vector<8x3xf32>
    %c0_13 = arith.constant 0 : index
    %c0_14 = arith.constant 0 : index
    %15 = vector.load %arg7[%c0_13, %c0_14] : memref<1x3xf32, #tpu.memory_space<vmem>>, vector<1x3xf32>
    %16 = vector.broadcast %15 : vector<1x3xf32> to vector<8x3xf32>
    %17 = arith.addf %14, %16 : vector<8x3xf32>
    %c0_15 = arith.constant 0 : index
    %c0_16 = arith.constant 0 : index
    %18 = vector.load %arg14[%c0_15, %c0_16] : memref<8x3xf32, #tpu.memory_space<vmem>>, vector<8x3xf32>
    tpu.vector_store %arg14[%c0_15, %c0_16], %17 {strides = array<i32>} : memref<8x3xf32, #tpu.memory_space<vmem>>, vector<8x3xf32>,
    %c0_17 = arith.constant 0 : index
    %c0_18 = arith.constant 0 : index
    %19 = vector.load %arg8[%c0_17, %c0_18] : memref<32x32xf32, #tpu.memory_space<vmem>>, vector<32x32xf32>
    %cst_19 = arith.constant dense<0.000000e+00> : vector<8x32xf32>
    %20 = tpu.matmul %12, %19, %cst_19 {dimension_numbers = #tpu.dot_dimension_numbers<[1], [0], [0], [1], [0, 0, 1, 1], [], []>} : vector<8x32xf32>, vector<32x32xf32>, vector<8x32xf32> -> vector<8x32xf32>
    %c0_20 = arith.constant 0 : index
    %c0_21 = arith.constant 0 : index
    %21 = vector.load %arg9[%c0_20, %c0_21] : memref<1x32xf32, #tpu.memory_space<vmem>>, vector<1x32xf32>
    %22 = vector.broadcast %21 : vector<1x32xf32> to vector<8x32xf32>
    %23 = arith.addf %20, %22 : vector<8x32xf32>
    %24 = math.tanh %23 : vector<8x32xf32>
    %c0_22 = arith.constant 0 : index
    %c0_23 = arith.constant 0 : index
    %25 = vector.load %arg10[%c0_22, %c0_23] : memref<32x128xf32, #tpu.memory_space<vmem>>, vector<32x128xf32>
    %cst_24 = arith.constant dense<0.000000e+00> : vector<8x128xf32>
    %26 = tpu.matmul %24, %25, %cst_24 {dimension_numbers = #tpu.dot_dimension_numbers<[1], [0], [0], [1], [0, 0, 1, 1], [], []>} : vector<8x32xf32>, vector<32x128xf32>, vector<8x128xf32> -> vector<8x128xf32>
    %c0_25 = arith.constant 0 : index
    %c0_26 = arith.constant 0 : index
    %27 = vector.load %arg11[%c0_25, %c0_26] : memref<1x128xf32, #tpu.memory_space<vmem>>, vector<1x128xf32>
    %28 = vector.broadcast %27 : vector<1x128xf32> to vector<8x128xf32>
    %29 = arith.addf %26, %28 : vector<8x128xf32>
    %30 = math.tanh %29 : vector<8x128xf32>
    %c0_27 = arith.constant 0 : index
    %c0_28 = arith.constant 0 : index
    %31 = vector.load %arg12[%c0_27, %c0_28] : memref<128x784xf32, #tpu.memory_space<vmem>>, vector<128x784xf32>
    %cst_29 = arith.constant dense<0.000000e+00> : vector<8x784xf32>
    %32 = tpu.matmul %30, %31, %cst_29 {dimension_numbers = #tpu.dot_dimension_numbers<[1], [0], [0], [1], [0, 0, 1, 1], [], []>} : vector<8x128xf32>, vector<128x784xf32>, vector<8x784xf32> -> vector<8x784xf32>
    %c0_30 = arith.constant 0 : index
    %c0_31 = arith.constant 0 : index
    %33 = vector.load %arg13[%c0_30, %c0_31] : memref<1x784xf32, #tpu.memory_space<vmem>>, vector<1x784xf32>
    %34 = vector.broadcast %33 : vector<1x784xf32> to vector<8x784xf32>
    %35 = arith.addf %32, %34 : vector<8x784xf32>
    %cst_32 = arith.constant 5.000000e-01 : f32
    %36 = vector.broadcast %cst_32 : f32 to vector<8x784xf32>
    %37 = arith.mulf %36, %35 : vector<8x784xf32>
    %38 = math.tanh %37 : vector<8x784xf32>
    %cst_33 = arith.constant 1.000000e+00 : f32
    %39 = vector.broadcast %cst_33 : f32 to vector<8x784xf32>
    %40 = arith.addf %38, %39 : vector<8x784xf32>
    %cst_34 = arith.constant 5.000000e-01 : f32
    %41 = vector.broadcast %cst_34 : f32 to vector<8x784xf32>
    %42 = arith.mulf %41, %40 : vector<8x784xf32>
    %c0_35 = arith.constant 0 : index
    %c0_36 = arith.constant 0 : index
    %43 = vector.load %arg15[%c0_35, %c0_36] : memref<8x784xf32, #tpu.memory_space<vmem>>, vector<8x784xf32>
    tpu.vector_store %arg15[%c0_35, %c0_36], %42 {strides = array<i32>} : memref<8x784xf32, #tpu.memory_space<vmem>>, vector<8x784xf32>,
    return
  }
  func.func @transform_0(%arg0: i32) -> (i32, i32) {
    %c0_i32 = arith.constant 0 : i32
    %c0_i32_0 = arith.constant 0 : i32
    return %arg0, %c0_i32 : i32, i32
  }
  func.func @transform_1(%arg0: i32) -> (i32, i32) {
    %c0_i32 = arith.constant 0 : i32
    %c0_i32_0 = arith.constant 0 : i32
    %c0_i32_1 = arith.constant 0 : i32
    return %c0_i32, %c0_i32_0 : i32, i32
  }
  func.func @transform_2(%arg0: i32) -> (i32, i32) {
    %c0_i32 = arith.constant 0 : i32
    %c0_i32_0 = arith.constant 0 : i32
    %c0_i32_1 = arith.constant 0 : i32
    return %c0_i32, %c0_i32_0 : i32, i32
  }
  func.func @transform_3(%arg0: i32) -> (i32, i32) {
    %c0_i32 = arith.constant 0 : i32
    %c0_i32_0 = arith.constant 0 : i32
    %c0_i32_1 = arith.constant 0 : i32
    return %c0_i32, %c0_i32_0 : i32, i32
  }
  func.func @transform_4(%arg0: i32) -> (i32, i32) {
    %c0_i32 = arith.constant 0 : i32
    %c0_i32_0 = arith.constant 0 : i32
    %c0_i32_1 = arith.constant 0 : i32
    return %c0_i32, %c0_i32_0 : i32, i32
  }
  func.func @transform_5(%arg0: i32) -> (i32, i32) {
    %c0_i32 = arith.constant 0 : i32
    %c0_i32_0 = arith.constant 0 : i32
    %c0_i32_1 = arith.constant 0 : i32
    return %c0_i32, %c0_i32_0 : i32, i32
  }
  func.func @transform_6(%arg0: i32) -> (i32, i32) {
    %c0_i32 = arith.constant 0 : i32
    %c0_i32_0 = arith.constant 0 : i32
    %c0_i32_1 = arith.constant 0 : i32
    return %c0_i32, %c0_i32_0 : i32, i32
  }
  func.func @transform_7(%arg0: i32) -> (i32, i32) {
    %c0_i32 = arith.constant 0 : i32
    %c0_i32_0 = arith.constant 0 : i32
    %c0_i32_1 = arith.constant 0 : i32
    return %c0_i32, %c0_i32_0 : i32, i32
  }
  func.func @transform_8(%arg0: i32) -> (i32, i32) {
    %c0_i32 = arith.constant 0 : i32
    %c0_i32_0 = arith.constant 0 : i32
    %c0_i32_1 = arith.constant 0 : i32
    return %c0_i32, %c0_i32_0 : i32, i32
  }
  func.func @transform_9(%arg0: i32) -> (i32, i32) {
    %c0_i32 = arith.constant 0 : i32
    %c0_i32_0 = arith.constant 0 : i32
    %c0_i32_1 = arith.constant 0 : i32
    return %c0_i32, %c0_i32_0 : i32, i32
  }
  func.func @transform_10(%arg0: i32) -> (i32, i32) {
    %c0_i32 = arith.constant 0 : i32
    %c0_i32_0 = arith.constant 0 : i32
    %c0_i32_1 = arith.constant 0 : i32
    return %c0_i32, %c0_i32_0 : i32, i32
  }
  func.func @transform_11(%arg0: i32) -> (i32, i32) {
    %c0_i32 = arith.constant 0 : i32
    %c0_i32_0 = arith.constant 0 : i32
    %c0_i32_1 = arith.constant 0 : i32
    return %c0_i32, %c0_i32_0 : i32, i32
  }
  func.func @transform_12(%arg0: i32) -> (i32, i32) {
    %c0_i32 = arith.constant 0 : i32
    %c0_i32_0 = arith.constant 0 : i32
    %c0_i32_1 = arith.constant 0 : i32
    return %c0_i32, %c0_i32_0 : i32, i32
  }
  func.func @transform_13(%arg0: i32) -> (i32, i32) {
    %c0_i32 = arith.constant 0 : i32
    %c0_i32_0 = arith.constant 0 : i32
    return %arg0, %c0_i32 : i32, i32
  }
  func.func @transform_14(%arg0: i32) -> (i32, i32) {
    %c0_i32 = arith.constant 0 : i32
    %c0_i32_0 = arith.constant 0 : i32
    return %arg0, %c0_i32 : i32, i32
  }
}

</mosaic_0001>

<llo_original>
// kernel: tpu_custom_call.1
$region0: #{tpu_custom_call.1}
  #allocation0 [shape = 'u32[]', space=smem, size = 0x4, offset = 0x4, fixed_abs, tag = 'smem constant byte address 0x4 - core index']
  #allocation1 [shape = 'u32[72,128]{1,0:T(1,128)}', space=vmem, size = 0x9000, scoped, tag = 'internal scratch']
  %s0 = inlined_call_operand.vmem [shape: f32[8,784], index: 0, kind: input, shape index: {}]
  %s1 = inlined_call_operand.vmem [shape: f32[784,128], index: 1, kind: input, shape index: {}]
  %s2 = inlined_call_operand.vmem [shape: f32[1,128], index: 2, kind: input, shape index: {}]
  %s3 = inlined_call_operand.vmem [shape: f32[128,32], index: 3, kind: input, shape index: {}]
  %s4 = inlined_call_operand.vmem [shape: f32[1,32], index: 4, kind: input, shape index: {}]
  %s5 = inlined_call_operand.vmem [shape: f32[32,3], index: 5, kind: input, shape index: {}]
  %s6 = inlined_call_operand.vmem [shape: f32[1,3], index: 6, kind: input, shape index: {}]
  %s7 = inlined_call_operand.vmem [shape: f32[32,32], index: 7, kind: input, shape index: {}]
  %s8 = inlined_call_operand.vmem [shape: f32[1,32], index: 8, kind: input, shape index: {}]
  %s9 = inlined_call_operand.vmem [shape: f32[32,128], index: 9, kind: input, shape index: {}]
  %s10 = inlined_call_operand.vmem [shape: f32[1,128], index: 10, kind: input, shape index: {}]
  %s11 = inlined_call_operand.vmem [shape: f32[128,784], index: 11, kind: input, shape index: {}]
  %s12 = inlined_call_operand.vmem [shape: f32[1,784], index: 12, kind: input, shape index: {}]
  %s13 = inlined_call_operand.vmem [shape: f32[8,3], index: 13, kind: output, shape index: {0}]
  %s14 = inlined_call_operand.hbm [shape: f32[8,784], index: 14, kind: output, shape index: {1}]
  %15 = xla_tuple %s13, %s14
  %s16 = sld [smem:[#allocation0]]
  $region70: #{tpu_custom_call.1} parent=0
    _
  %s18 = ssub.s32 1, %s16
  %s19 = scalar_select 0, %s18, %s16
  $region1: #{tpu_custom_call.1} parent=0
    #allocation2 [shape = 'u8[28672]{0}', space=vmem, size = 0x7000, scoped, tag = 'output window, operand 1, single buffered']
    #allocation3 [shape = 's32[1]{0}', space=sflag, size = 0x4, scoped, tag = 'scoped memory for tpu_custom_call.1']
    %20 = vsyncpa [#allocation3], 0
    // Predicated region
    $region2: #{tpu_custom_call.1} parent=1 // pred_check
      _
    $region3: #{tpu_custom_call.1} parent=1 // pred_check_branch
      %22 = sbr.rel (0) target = $region5
    $region4: #{tpu_custom_call.1} parent=1 // pred_region
      _
    $region5: #{tpu_custom_call.1} parent=1 // pred_fallthru
      _
    // Predicated region
    $region6: #{tpu_custom_call.1} parent=1 // pred_check
      _
    $region7: #{tpu_custom_call.1} parent=1 // pred_check_branch
      %24 = sbr.rel (0) target = $region9
    $region8: #{tpu_custom_call.1} parent=1 // pred_region
      _
    $region9: #{tpu_custom_call.1} parent=1 // pred_fallthru
      _
    // Predicated region
    $region10: #{tpu_custom_call.1} parent=1 // pred_check
      _
    $region11: #{tpu_custom_call.1} parent=1 // pred_check_branch
      %26 = sbr.rel (0) target = $region13
    $region12: #{tpu_custom_call.1} parent=1 // pred_region
      _
    $region13: #{tpu_custom_call.1} parent=1 // pred_fallthru
      _
    // Predicated region
    $region14: #{tpu_custom_call.1} parent=1 // pred_check
      _
    $region15: #{tpu_custom_call.1} parent=1 // pred_check_branch
      %28 = sbr.rel (0) target = $region17
    $region16: #{tpu_custom_call.1} parent=1 // pred_region
      _
    $region17: #{tpu_custom_call.1} parent=1 // pred_fallthru
      _
    // Predicated region
    $region18: #{tpu_custom_call.1} parent=1 // pred_check
      _
    $region19: #{tpu_custom_call.1} parent=1 // pred_check_branch
      %30 = sbr.rel (0) target = $region21
    $region20: #{tpu_custom_call.1} parent=1 // pred_region
      _
    $region21: #{tpu_custom_call.1} parent=1 // pred_fallthru
      _
    // Predicated region
    $region22: #{tpu_custom_call.1} parent=1 // pred_check
      _
    $region23: #{tpu_custom_call.1} parent=1 // pred_check_branch
      %32 = sbr.rel (0) target = $region25
    $region24: #{tpu_custom_call.1} parent=1 // pred_region
      _
    $region25: #{tpu_custom_call.1} parent=1 // pred_fallthru
      _
    // Predicated region
    $region26: #{tpu_custom_call.1} parent=1 // pred_check
      _
    $region27: #{tpu_custom_call.1} parent=1 // pred_check_branch
      %34 = sbr.rel (0) target = $region29
    $region28: #{tpu_custom_call.1} parent=1 // pred_region
      _
    $region29: #{tpu_custom_call.1} parent=1 // pred_fallthru
      _
    // Predicated region
    $region30: #{tpu_custom_call.1} parent=1 // pred_check
      _
    $region31: #{tpu_custom_call.1} parent=1 // pred_check_branch
      %36 = sbr.rel (0) target = $region33
    $region32: #{tpu_custom_call.1} parent=1 // pred_region
      _
    $region33: #{tpu_custom_call.1} parent=1 // pred_fallthru
      _
    // Predicated region
    $region34: #{tpu_custom_call.1} parent=1 // pred_check
      _
    $region35: #{tpu_custom_call.1} parent=1 // pred_check_branch
      %38 = sbr.rel (0) target = $region37
    $region36: #{tpu_custom_call.1} parent=1 // pred_region
      _
    $region37: #{tpu_custom_call.1} parent=1 // pred_fallthru
      _
    // Predicated region
    $region38: #{tpu_custom_call.1} parent=1 // pred_check
      _
    $region39: #{tpu_custom_call.1} parent=1 // pred_check_branch
      %40 = sbr.rel (0) target = $region41
    $region40: #{tpu_custom_call.1} parent=1 // pred_region
      _
    $region41: #{tpu_custom_call.1} parent=1 // pred_fallthru
      _
    // Predicated region
    $region42: #{tpu_custom_call.1} parent=1 // pred_check
      _
    $region43: #{tpu_custom_call.1} parent=1 // pred_check_branch
      %42 = sbr.rel (0) target = $region45
    $region44: #{tpu_custom_call.1} parent=1 // pred_region
      _
    $region45: #{tpu_custom_call.1} parent=1 // pred_fallthru
      _
    // Predicated region
    $region46: #{tpu_custom_call.1} parent=1 // pred_check
      _
    $region47: #{tpu_custom_call.1} parent=1 // pred_check_branch
      %44 = sbr.rel (0) target = $region49
    $region48: #{tpu_custom_call.1} parent=1 // pred_region
      _
    $region49: #{tpu_custom_call.1} parent=1 // pred_fallthru
      _
    // Predicated region
    $region50: #{tpu_custom_call.1} parent=1 // pred_check
      _
    $region51: #{tpu_custom_call.1} parent=1 // pred_check_branch
      %46 = sbr.rel (0) target = $region53
    $region52: #{tpu_custom_call.1} parent=1 // pred_region
      _
    $region53: #{tpu_custom_call.1} parent=1 // pred_fallthru
      _
    %v47 = vld [vmem:[%s0] sm:$0xff]
    %v48 = vld [vmem:[%s0 + $0x8] sm:$0xff]
    %v49 = vld [vmem:[%s0 + $0x10] sm:$0xff]
    %v50 = vld [vmem:[%s0 + $0x18] sm:$0xff]
    %v51 = vld [vmem:[%s0 + $0x20] sm:$0xff]
    %v52 = vld [vmem:[%s0 + $0x28] sm:$0xff]
    %v53 = vld [vmem:[%s0 + $0x30] sm:$0xff]
    %v54 = vld [vmem:[%s1] sm:$0xff]
    %v55 = vld [vmem:[%s1 + $0x8] sm:$0xff]
    %v56 = vld [vmem:[%s1 + $0x10] sm:$0xff]
    %v57 = vld [vmem:[%s1 + $0x18] sm:$0xff]
    %v58 = vld [vmem:[%s1 + $0x20] sm:$0xff]
    %v59 = vld [vmem:[%s1 + $0x28] sm:$0xff]
    %v60 = vld [vmem:[%s1 + $0x30] sm:$0xff]
    %v61 = vld [vmem:[%s1 + $0x38] sm:$0xff]
    %v62 = vld [vmem:[%s1 + $0x40] sm:$0xff]
    %v63 = vld [vmem:[%s1 + $0x48] sm:$0xff]
    %v64 = vld [vmem:[%s1 + $0x50] sm:$0xff]
    %v65 = vld [vmem:[%s1 + $0x58] sm:$0xff]
    %v66 = vld [vmem:[%s1 + $0x60] sm:$0xff]
    %v67 = vld [vmem:[%s1 + $0x68] sm:$0xff]
    %v68 = vld [vmem:[%s1 + $0x70] sm:$0xff]
    %v69 = vld [vmem:[%s1 + $0x78] sm:$0xff]
    %v70 = vld [vmem:[%s1 + $0x80] sm:$0xff]
    %v71 = vld [vmem:[%s1 + $0x88] sm:$0xff]
    %v72 = vld [vmem:[%s1 + $0x90] sm:$0xff]
    %v73 = vld [vmem:[%s1 + $0x98] sm:$0xff]
    %v74 = vld [vmem:[%s1 + $0xa0] sm:$0xff]
    %v75 = vld [vmem:[%s1 + $0xa8] sm:$0xff]
    %v76 = vld [vmem:[%s1 + $0xb0] sm:$0xff]
    %v77 = vld [vmem:[%s1 + $0xb8] sm:$0xff]
    %v78 = vld [vmem:[%s1 + $0xc0] sm:$0xff]
    %v79 = vld [vmem:[%s1 + $0xc8] sm:$0xff]
    %v80 = vld [vmem:[%s1 + $0xd0] sm:$0xff]
    %v81 = vld [vmem:[%s1 + $0xd8] sm:$0xff]
    %v82 = vld [vmem:[%s1 + $0xe0] sm:$0xff]
    %v83 = vld [vmem:[%s1 + $0xe8] sm:$0xff]
    %v84 = vld [vmem:[%s1 + $0xf0] sm:$0xff]
    %v85 = vld [vmem:[%s1 + $0xf8] sm:$0xff]
    %v86 = vld [vmem:[%s1 + $0x100] sm:$0xff]
    %v87 = vld [vmem:[%s1 + $0x108] sm:$0xff]
    %v88 = vld [vmem:[%s1 + $0x110] sm:$0xff]
    %v89 = vld [vmem:[%s1 + $0x118] sm:$0xff]
    %v90 = vld [vmem:[%s1 + $0x120] sm:$0xff]
    %v91 = vld [vmem:[%s1 + $0x128] sm:$0xff]
    %v92 = vld [vmem:[%s1 + $0x130] sm:$0xff]
    %v93 = vld [vmem:[%s1 + $0x138] sm:$0xff]
    %v94 = vld [vmem:[%s1 + $0x140] sm:$0xff]
    %v95 = vld [vmem:[%s1 + $0x148] sm:$0xff]
    %v96 = vld [vmem:[%s1 + $0x150] sm:$0xff]
    %v97 = vld [vmem:[%s1 + $0x158] sm:$0xff]
    %v98 = vld [vmem:[%s1 + $0x160] sm:$0xff]
    %v99 = vld [vmem:[%s1 + $0x168] sm:$0xff]
    %v100 = vld [vmem:[%s1 + $0x170] sm:$0xff]
    %v101 = vld [vmem:[%s1 + $0x178] sm:$0xff]
    %v102 = vld [vmem:[%s1 + $0x180] sm:$0xff]
    %v103 = vld [vmem:[%s1 + $0x188] sm:$0xff]
    %v104 = vld [vmem:[%s1 + $0x190] sm:$0xff]
    %v105 = vld [vmem:[%s1 + $0x198] sm:$0xff]
    %v106 = vld [vmem:[%s1 + $0x1a0] sm:$0xff]
    %v107 = vld [vmem:[%s1 + $0x1a8] sm:$0xff]
    %v108 = vld [vmem:[%s1 + $0x1b0] sm:$0xff]
    %v109 = vld [vmem:[%s1 + $0x1b8] sm:$0xff]
    %v110 = vld [vmem:[%s1 + $0x1c0] sm:$0xff]
    %v111 = vld [vmem:[%s1 + $0x1c8] sm:$0xff]
    %v112 = vld [vmem:[%s1 + $0x1d0] sm:$0xff]
    %v113 = vld [vmem:[%s1 + $0x1d8] sm:$0xff]
    %v114 = vld [vmem:[%s1 + $0x1e0] sm:$0xff]
    %v115 = vld [vmem:[%s1 + $0x1e8] sm:$0xff]
    %v116 = vld [vmem:[%s1 + $0x1f0] sm:$0xff]
    %v117 = vld [vmem:[%s1 + $0x1f8] sm:$0xff]
    %v118 = vld [vmem:[%s1 + $0x200] sm:$0xff]
    %v119 = vld [vmem:[%s1 + $0x208] sm:$0xff]
    %v120 = vld [vmem:[%s1 + $0x210] sm:$0xff]
    %v121 = vld [vmem:[%s1 + $0x218] sm:$0xff]
    %v122 = vld [vmem:[%s1 + $0x220] sm:$0xff]
    %v123 = vld [vmem:[%s1 + $0x228] sm:$0xff]
    %v124 = vld [vmem:[%s1 + $0x230] sm:$0xff]
    %v125 = vld [vmem:[%s1 + $0x238] sm:$0xff]
    %v126 = vld [vmem:[%s1 + $0x240] sm:$0xff]
    %v127 = vld [vmem:[%s1 + $0x248] sm:$0xff]
    %v128 = vld [vmem:[%s1 + $0x250] sm:$0xff]
    %v129 = vld [vmem:[%s1 + $0x258] sm:$0xff]
    %v130 = vld [vmem:[%s1 + $0x260] sm:$0xff]
    %v131 = vld [vmem:[%s1 + $0x268] sm:$0xff]
    %v132 = vld [vmem:[%s1 + $0x270] sm:$0xff]
    %v133 = vld [vmem:[%s1 + $0x278] sm:$0xff]
    %v134 = vld [vmem:[%s1 + $0x280] sm:$0xff]
    %v135 = vld [vmem:[%s1 + $0x288] sm:$0xff]
    %v136 = vld [vmem:[%s1 + $0x290] sm:$0xff]
    %v137 = vld [vmem:[%s1 + $0x298] sm:$0xff]
    %v138 = vld [vmem:[%s1 + $0x2a0] sm:$0xff]
    %v139 = vld [vmem:[%s1 + $0x2a8] sm:$0xff]
    %v140 = vld [vmem:[%s1 + $0x2b0] sm:$0xff]
    %v141 = vld [vmem:[%s1 + $0x2b8] sm:$0xff]
    %v142 = vld [vmem:[%s1 + $0x2c0] sm:$0xff]
    %v143 = vld [vmem:[%s1 + $0x2c8] sm:$0xff]
    %v144 = vld [vmem:[%s1 + $0x2d0] sm:$0xff]
    %v145 = vld [vmem:[%s1 + $0x2d8] sm:$0xff]
    %v146 = vld [vmem:[%s1 + $0x2e0] sm:$0xff]
    %v147 = vld [vmem:[%s1 + $0x2e8] sm:$0xff]
    %v148 = vld [vmem:[%s1 + $0x2f0] sm:$0xff]
    %v149 = vld [vmem:[%s1 + $0x2f8] sm:$0xff]
    %v150 = vld [vmem:[%s1 + $0x300] sm:$0xff]
    %v151 = vld [vmem:[%s1 + $0x308] sm:$0xff]
    %v152 = vld [vmem:[%s2] sm:$0x1]
    %v154 = vperm.slane %v152, 0
    %vm156 = vcmask 130048
    %v158 = vsel %vm156, %v53, 0
    %160 = vmatpush.msra.mxu0 %v69
    %161 = vmatpush.msra.mxu0 %v68
    %162 = vmatpush.msra.mxu0 %v67
    %163 = vmatpush.msra.mxu0 %v66
    %164 = vmatpush.msra.mxu0 %v65
    %165 = vmatpush.msra.mxu0 %v64
    %166 = vmatpush.msra.mxu0 %v63
    %167 = vmatpush.msra.mxu0 %v62
    %168 = vmatpush.msra.mxu0 %v61
    %169 = vmatpush.msra.mxu0 %v60
    %170 = vmatpush.msra.mxu0 %v59
    %171 = vmatpush.msra.mxu0 %v58
    %172 = vmatpush.msra.mxu0 %v57
    %173 = vmatpush.msra.mxu0 %v56
    %174 = vmatpush.msra.mxu0 %v55
    %175 = vmatpush.msra.mxu0 %v54
    %176 = vmatmul.f32.gmra.mxu0 %v47
    %v177 = vpop.f32.mrf.mxu0
    %v178 = vadd.f32 %v154, %v177
    %179 = vdwg.mxu0
    %180 = vmatpush.msra.mxu0 %v85
    %181 = vmatpush.msra.mxu0 %v84
    %182 = vmatpush.msra.mxu0 %v83
    %183 = vmatpush.msra.mxu0 %v82
    %184 = vmatpush.msra.mxu0 %v81
    %185 = vmatpush.msra.mxu0 %v80
    %186 = vmatpush.msra.mxu0 %v79
    %187 = vmatpush.msra.mxu0 %v78
    %188 = vmatpush.msra.mxu0 %v77
    %189 = vmatpush.msra.mxu0 %v76
    %190 = vmatpush.msra.mxu0 %v75
    %191 = vmatpush.msra.mxu0 %v74
    %192 = vmatpush.msra.mxu0 %v73
    %193 = vmatpush.msra.mxu0 %v72
    %194 = vmatpush.msra.mxu0 %v71
    %195 = vmatpush.msra.mxu0 %v70
    %196 = vmatmul.f32.gmra.mxu0 %v48
    %v197 = vpop.f32.mrf.mxu0
    %v198 = vadd.f32 %v178, %v197
    %199 = vdwg.mxu0
    %200 = vmatpush.msra.mxu0 %v101
    %201 = vmatpush.msra.mxu0 %v100
    %202 = vmatpush.msra.mxu0 %v99
    %203 = vmatpush.msra.mxu0 %v98
    %204 = vmatpush.msra.mxu0 %v97
    %205 = vmatpush.msra.mxu0 %v96
    %206 = vmatpush.msra.mxu0 %v95
    %207 = vmatpush.msra.mxu0 %v94
    %208 = vmatpush.msra.mxu0 %v93
    %209 = vmatpush.msra.mxu0 %v92
    %210 = vmatpush.msra.mxu0 %v91
    %211 = vmatpush.msra.mxu0 %v90
    %212 = vmatpush.msra.mxu0 %v89
    %213 = vmatpush.msra.mxu0 %v88
    %214 = vmatpush.msra.mxu0 %v87
    %215 = vmatpush.msra.mxu0 %v86
    %216 = vmatmul.f32.gmra.mxu0 %v49
    %v217 = vpop.f32.mrf.mxu0
    %v218 = vadd.f32 %v198, %v217
    %219 = vdwg.mxu0
    %220 = vmatpush.msra.mxu0 %v117
    %221 = vmatpush.msra.mxu0 %v116
    %222 = vmatpush.msra.mxu0 %v115
    %223 = vmatpush.msra.mxu0 %v114
    %224 = vmatpush.msra.mxu0 %v113
    %225 = vmatpush.msra.mxu0 %v112
    %226 = vmatpush.msra.mxu0 %v111
    %227 = vmatpush.msra.mxu0 %v110
    %228 = vmatpush.msra.mxu0 %v109
    %229 = vmatpush.msra.mxu0 %v108
    %230 = vmatpush.msra.mxu0 %v107
    %231 = vmatpush.msra.mxu0 %v106
    %232 = vmatpush.msra.mxu0 %v105
    %233 = vmatpush.msra.mxu0 %v104
    %234 = vmatpush.msra.mxu0 %v103
    %235 = vmatpush.msra.mxu0 %v102
    %236 = vmatmul.f32.gmra.mxu0 %v50
    %v237 = vpop.f32.mrf.mxu0
    %v238 = vadd.f32 %v218, %v237
    %239 = vdwg.mxu0
    %240 = vmatpush.msra.mxu0 %v133
    %241 = vmatpush.msra.mxu0 %v132
    %242 = vmatpush.msra.mxu0 %v131
    %243 = vmatpush.msra.mxu0 %v130
    %244 = vmatpush.msra.mxu0 %v129
    %245 = vmatpush.msra.mxu0 %v128
    %246 = vmatpush.msra.mxu0 %v127
    %247 = vmatpush.msra.mxu0 %v126
    %248 = vmatpush.msra.mxu0 %v125
    %249 = vmatpush.msra.mxu0 %v124
    %250 = vmatpush.msra.mxu0 %v123
    %251 = vmatpush.msra.mxu0 %v122
    %252 = vmatpush.msra.mxu0 %v121
    %253 = vmatpush.msra.mxu0 %v120
    %254 = vmatpush.msra.mxu0 %v119
    %255 = vmatpush.msra.mxu0 %v118
    %256 = vmatmul.f32.gmra.mxu0 %v51
    %v257 = vpop.f32.mrf.mxu0
    %v258 = vadd.f32 %v238, %v257
    %259 = vdwg.mxu0
    %260 = vmatpush.msra.mxu0 %v149
    %261 = vmatpush.msra.mxu0 %v148
    %262 = vmatpush.msra.mxu0 %v147
    %263 = vmatpush.msra.mxu0 %v146
    %264 = vmatpush.msra.mxu0 %v145
    %265 = vmatpush.msra.mxu0 %v144
    %266 = vmatpush.msra.mxu0 %v143
    %267 = vmatpush.msra.mxu0 %v142
    %268 = vmatpush.msra.mxu0 %v141
    %269 = vmatpush.msra.mxu0 %v140
    %270 = vmatpush.msra.mxu0 %v139
    %271 = vmatpush.msra.mxu0 %v138
    %272 = vmatpush.msra.mxu0 %v137
    %273 = vmatpush.msra.mxu0 %v136
    %274 = vmatpush.msra.mxu0 %v135
    %275 = vmatpush.msra.mxu0 %v134
    %276 = vmatmul.f32.gmra.mxu0 %v52
    %v277 = vpop.f32.mrf.mxu0
    %v278 = vadd.f32 %v258, %v277
    %279 = vdwg.mxu0
    %280 = vmatpush.msra.mxu0 0.0
    %281 = vmatpush.msra.mxu0 0.0
    %282 = vmatpush.msra.mxu0 0.0
    %283 = vmatpush.msra.mxu0 0.0
    %284 = vmatpush.msra.mxu0 0.0
    %285 = vmatpush.msra.mxu0 0.0
    %286 = vmatpush.msra.mxu0 0.0
    %287 = vmatpush.msra.mxu0 0.0
    %288 = vmatpush.msra.mxu0 0.0
    %289 = vmatpush.msra.mxu0 0.0
    %290 = vmatpush.msra.mxu0 0.0
    %291 = vmatpush.msra.mxu0 0.0
    %292 = vmatpush.msra.mxu0 0.0
    %293 = vmatpush.msra.mxu0 0.0
    %294 = vmatpush.msra.mxu0 %v151
    %295 = vmatpush.msra.mxu0 %v150
    %296 = vmatmul.f32.gmra.mxu0 %v158
    %v297 = vpop.f32.mrf.mxu0
    %v298 = vadd.f32 %v278, %v297
    %299 = vdwg.mxu0
    %v300 = vtanh.pop %v298
    %v301 = vld [vmem:[%s3] sm:$0xff]
    %v302 = vld [vmem:[%s3 + $0x8] sm:$0xff]
    %v303 = vld [vmem:[%s3 + $0x10] sm:$0xff]
    %v304 = vld [vmem:[%s3 + $0x18] sm:$0xff]
    %v305 = vld [vmem:[%s3 + $0x20] sm:$0xff]
    %v306 = vld [vmem:[%s3 + $0x28] sm:$0xff]
    %v307 = vld [vmem:[%s3 + $0x30] sm:$0xff]
    %v308 = vld [vmem:[%s3 + $0x38] sm:$0xff]
    %v309 = vld [vmem:[%s3 + $0x40] sm:$0xff]
    %v310 = vld [vmem:[%s3 + $0x48] sm:$0xff]
    %v311 = vld [vmem:[%s3 + $0x50] sm:$0xff]
    %v312 = vld [vmem:[%s3 + $0x58] sm:$0xff]
    %v313 = vld [vmem:[%s3 + $0x60] sm:$0xff]
    %v314 = vld [vmem:[%s3 + $0x68] sm:$0xff]
    %v315 = vld [vmem:[%s3 + $0x70] sm:$0xff]
    %v316 = vld [vmem:[%s3 + $0x78] sm:$0xff]
    %v317 = vld [vmem:[%s4] sm:$0x1]
    %v319 = vperm.slane %v317, 0
    %321 = vmatpush.msra.mxu0 %v316
    %322 = vmatpush.msra.mxu0 %v315
    %323 = vmatpush.msra.mxu0 %v314
    %324 = vmatpush.msra.mxu0 %v313
    %325 = vmatpush.msra.mxu0 %v312
    %326 = vmatpush.msra.mxu0 %v311
    %327 = vmatpush.msra.mxu0 %v310
    %328 = vmatpush.msra.mxu0 %v309
    %329 = vmatpush.msra.mxu0 %v308
    %330 = vmatpush.msra.mxu0 %v307
    %331 = vmatpush.msra.mxu0 %v306
    %332 = vmatpush.msra.mxu0 %v305
    %333 = vmatpush.msra.mxu0 %v304
    %334 = vmatpush.msra.mxu0 %v303
    %335 = vmatpush.msra.mxu0 %v302
    %336 = vmatpush.msra.mxu0 %v301
    %337 = vmatmul.f32.gmra.mxu0 %v300
    %v338 = vpop.f32.mrf.mxu0
    %v339 = vadd.f32 %v319, %v338
    %340 = vdwg.mxu0
    %v341 = vtanh.pop %v339
    %v342 = vld [vmem:[%s5] sm:$0xff]
    %v343 = vld [vmem:[%s5 + $0x8] sm:$0xff]
    %v344 = vld [vmem:[%s5 + $0x10] sm:$0xff]
    %v345 = vld [vmem:[%s5 + $0x18] sm:$0xff]
    %v346 = vld [vmem:[%s6] sm:$0x1]
    %v348 = vperm.slane %v346, 0
    %vm350 = vcmask 261120
    %v352 = vsel %vm350, %v341, 0
    %354 = vmatpush.msra.mxu0 0.0
    %355 = vmatpush.msra.mxu0 0.0
    %356 = vmatpush.msra.mxu0 0.0
    %357 = vmatpush.msra.mxu0 0.0
    %358 = vmatpush.msra.mxu0 0.0
    %359 = vmatpush.msra.mxu0 0.0
    %360 = vmatpush.msra.mxu0 0.0
    %361 = vmatpush.msra.mxu0 0.0
    %362 = vmatpush.msra.mxu0 0.0
    %363 = vmatpush.msra.mxu0 0.0
    %364 = vmatpush.msra.mxu0 0.0
    %365 = vmatpush.msra.mxu0 0.0
    %366 = vmatpush.msra.mxu0 %v345
    %367 = vmatpush.msra.mxu0 %v344
    %368 = vmatpush.msra.mxu0 %v343
    %369 = vmatpush.msra.mxu0 %v342
    %370 = vmatmul.f32.gmra.mxu0 %v352
    %v371 = vpop.f32.mrf.mxu0
    %v372 = vadd.f32 %v348, %v371
    %373 = vdwg.mxu0
    %vm374 = vcmask 23552
    %375 = vst.msk [vmem:[%s13] sm:$0xff] %vm374, %v372
    %v376 = vld [vmem:[%s7] sm:$0xff]
    %v377 = vld [vmem:[%s7 + $0x8] sm:$0xff]
    %v378 = vld [vmem:[%s7 + $0x10] sm:$0xff]
    %v379 = vld [vmem:[%s7 + $0x18] sm:$0xff]
    %v380 = vld [vmem:[%s8] sm:$0x1]
    %v382 = vperm.slane %v380, 0
    %384 = vmatpush.msra.mxu0 0.0
    %385 = vmatpush.msra.mxu0 0.0
    %386 = vmatpush.msra.mxu0 0.0
    %387 = vmatpush.msra.mxu0 0.0
    %388 = vmatpush.msra.mxu0 0.0
    %389 = vmatpush.msra.mxu0 0.0
    %390 = vmatpush.msra.mxu0 0.0
    %391 = vmatpush.msra.mxu0 0.0
    %392 = vmatpush.msra.mxu0 0.0
    %393 = vmatpush.msra.mxu0 0.0
    %394 = vmatpush.msra.mxu0 0.0
    %395 = vmatpush.msra.mxu0 0.0
    %396 = vmatpush.msra.mxu0 %v379
    %397 = vmatpush.msra.mxu0 %v378
    %398 = vmatpush.msra.mxu0 %v377
    %399 = vmatpush.msra.mxu0 %v376
    %400 = vmatmul.f32.gmra.mxu0 %v352
    %v401 = vpop.f32.mrf.mxu0
    %v402 = vadd.f32 %v382, %v401
    %403 = vdwg.mxu0
    %v404 = vtanh.pop %v402
    %v405 = vld [vmem:[%s9] sm:$0xff]
    %v406 = vld [vmem:[%s9 + $0x8] sm:$0xff]
    %v407 = vld [vmem:[%s9 + $0x10] sm:$0xff]
    %v408 = vld [vmem:[%s9 + $0x18] sm:$0xff]
    %v409 = vld [vmem:[%s10] sm:$0x1]
    %v411 = vperm.slane %v409, 0
    %v414 = vsel %vm350, %v404, 0
    %416 = vmatpush.msra.mxu0 0.0
    %417 = vmatpush.msra.mxu0 0.0
    %418 = vmatpush.msra.mxu0 0.0
    %419 = vmatpush.msra.mxu0 0.0
    %420 = vmatpush.msra.mxu0 0.0
    %421 = vmatpush.msra.mxu0 0.0
    %422 = vmatpush.msra.mxu0 0.0
    %423 = vmatpush.msra.mxu0 0.0
    %424 = vmatpush.msra.mxu0 0.0
    %425 = vmatpush.msra.mxu0 0.0
    %426 = vmatpush.msra.mxu0 0.0
    %427 = vmatpush.msra.mxu0 0.0
    %428 = vmatpush.msra.mxu0 %v408
    %429 = vmatpush.msra.mxu0 %v407
    %430 = vmatpush.msra.mxu0 %v406
    %431 = vmatpush.msra.mxu0 %v405
    %432 = vmatmul.f32.gmra.mxu0 %v414
    %v433 = vpop.f32.mrf.mxu0
    %v434 = vadd.f32 %v411, %v433
    %435 = vdwg.mxu0
    %v436 = vtanh.pop %v434
    %v437 = vld [vmem:[%s11] sm:$0xff]
    %v438 = vld [vmem:[%s11 + $0x8] sm:$0xff]
    %v439 = vld [vmem:[%s11 + $0x10] sm:$0xff]
    %v440 = vld [vmem:[%s11 + $0x18] sm:$0xff]
    %v441 = vld [vmem:[%s11 + $0x20] sm:$0xff]
    %v442 = vld [vmem:[%s11 + $0x28] sm:$0xff]
    %v443 = vld [vmem:[%s11 + $0x30] sm:$0xff]
    %v444 = vld [vmem:[%s11 + $0x38] sm:$0xff]
    %v445 = vld [vmem:[%s11 + $0x40] sm:$0xff]
    %v446 = vld [vmem:[%s11 + $0x48] sm:$0xff]
    %v447 = vld [vmem:[%s11 + $0x50] sm:$0xff]
    %v448 = vld [vmem:[%s11 + $0x58] sm:$0xff]
    %v449 = vld [vmem:[%s11 + $0x60] sm:$0xff]
    %v450 = vld [vmem:[%s11 + $0x68] sm:$0xff]
    %v451 = vld [vmem:[%s11 + $0x70] sm:$0xff]
    %v452 = vld [vmem:[%s11 + $0x78] sm:$0xff]
    %v453 = vld [vmem:[%s11 + $0x80] sm:$0xff]
    %v454 = vld [vmem:[%s11 + $0x88] sm:$0xff]
    %v455 = vld [vmem:[%s11 + $0x90] sm:$0xff]
    %v456 = vld [vmem:[%s11 + $0x98] sm:$0xff]
    %v457 = vld [vmem:[%s11 + $0xa0] sm:$0xff]
    %v458 = vld [vmem:[%s11 + $0xa8] sm:$0xff]
    %v459 = vld [vmem:[%s11 + $0xb0] sm:$0xff]
    %v460 = vld [vmem:[%s11 + $0xb8] sm:$0xff]
    %v461 = vld [vmem:[%s11 + $0xc0] sm:$0xff]
    %v462 = vld [vmem:[%s11 + $0xc8] sm:$0xff]
    %v463 = vld [vmem:[%s11 + $0xd0] sm:$0xff]
    %v464 = vld [vmem:[%s11 + $0xd8] sm:$0xff]
    %v465 = vld [vmem:[%s11 + $0xe0] sm:$0xff]
    %v466 = vld [vmem:[%s11 + $0xe8] sm:$0xff]
    %v467 = vld [vmem:[%s11 + $0xf0] sm:$0xff]
    %v468 = vld [vmem:[%s11 + $0xf8] sm:$0xff]
    %v469 = vld [vmem:[%s11 + $0x100] sm:$0xff]
    %v470 = vld [vmem:[%s11 + $0x108] sm:$0xff]
    %v471 = vld [vmem:[%s11 + $0x110] sm:$0xff]
    %v472 = vld [vmem:[%s11 + $0x118] sm:$0xff]
    %v473 = vld [vmem:[%s11 + $0x120] sm:$0xff]
    %v474 = vld [vmem:[%s11 + $0x128] sm:$0xff]
    %v475 = vld [vmem:[%s11 + $0x130] sm:$0xff]
    %v476 = vld [vmem:[%s11 + $0x138] sm:$0xff]
    %v477 = vld [vmem:[%s11 + $0x140] sm:$0xff]
    %v478 = vld [vmem:[%s11 + $0x148] sm:$0xff]
    %v479 = vld [vmem:[%s11 + $0x150] sm:$0xff]
    %v480 = vld [vmem:[%s11 + $0x158] sm:$0xff]
    %v481 = vld [vmem:[%s11 + $0x160] sm:$0xff]
    %v482 = vld [vmem:[%s11 + $0x168] sm:$0xff]
    %v483 = vld [vmem:[%s11 + $0x170] sm:$0xff]
    %v484 = vld [vmem:[%s11 + $0x178] sm:$0xff]
    %v485 = vld [vmem:[%s11 + $0x180] sm:$0xff]
    %v486 = vld [vmem:[%s11 + $0x188] sm:$0xff]
    %v487 = vld [vmem:[%s11 + $0x190] sm:$0xff]
    %v488 = vld [vmem:[%s11 + $0x198] sm:$0xff]
    %v489 = vld [vmem:[%s11 + $0x1a0] sm:$0xff]
    %v490 = vld [vmem:[%s11 + $0x1a8] sm:$0xff]
    %v491 = vld [vmem:[%s11 + $0x1b0] sm:$0xff]
    %v492 = vld [vmem:[%s11 + $0x1b8] sm:$0xff]
    %v493 = vld [vmem:[%s11 + $0x1c0] sm:$0xff]
    %v494 = vld [vmem:[%s11 + $0x1c8] sm:$0xff]
    %v495 = vld [vmem:[%s11 + $0x1d0] sm:$0xff]
    %v496 = vld [vmem:[%s11 + $0x1d8] sm:$0xff]
    %v497 = vld [vmem:[%s11 + $0x1e0] sm:$0xff]
    %v498 = vld [vmem:[%s11 + $0x1e8] sm:$0xff]
    %v499 = vld [vmem:[%s11 + $0x1f0] sm:$0xff]
    %v500 = vld [vmem:[%s11 + $0x1f8] sm:$0xff]
    %v501 = vld [vmem:[%s11 + $0x200] sm:$0xff]
    %v502 = vld [vmem:[%s11 + $0x208] sm:$0xff]
    %v503 = vld [vmem:[%s11 + $0x210] sm:$0xff]
    %v504 = vld [vmem:[%s11 + $0x218] sm:$0xff]
    %v505 = vld [vmem:[%s11 + $0x220] sm:$0xff]
    %v506 = vld [vmem:[%s11 + $0x228] sm:$0xff]
    %v507 = vld [vmem:[%s11 + $0x230] sm:$0xff]
    %v508 = vld [vmem:[%s11 + $0x238] sm:$0xff]
    %v509 = vld [vmem:[%s11 + $0x240] sm:$0xff]
    %v510 = vld [vmem:[%s11 + $0x248] sm:$0xff]
    %v511 = vld [vmem:[%s11 + $0x250] sm:$0xff]
    %v512 = vld [vmem:[%s11 + $0x258] sm:$0xff]
    %v513 = vld [vmem:[%s11 + $0x260] sm:$0xff]
    %v514 = vld [vmem:[%s11 + $0x268] sm:$0xff]
    %v515 = vld [vmem:[%s11 + $0x270] sm:$0xff]
    %v516 = vld [vmem:[%s11 + $0x278] sm:$0xff]
    %v517 = vld [vmem:[%s11 + $0x280] sm:$0xff]
    %v518 = vld [vmem:[%s11 + $0x288] sm:$0xff]
    %v519 = vld [vmem:[%s11 + $0x290] sm:$0xff]
    %v520 = vld [vmem:[%s11 + $0x298] sm:$0xff]
    %v521 = vld [vmem:[%s11 + $0x2a0] sm:$0xff]
    %v522 = vld [vmem:[%s11 + $0x2a8] sm:$0xff]
    %v523 = vld [vmem:[%s11 + $0x2b0] sm:$0xff]
    %v524 = vld [vmem:[%s11 + $0x2b8] sm:$0xff]
    %v525 = vld [vmem:[%s11 + $0x2c0] sm:$0xff]
    %v526 = vld [vmem:[%s11 + $0x2c8] sm:$0xff]
    %v527 = vld [vmem:[%s11 + $0x2d0] sm:$0xff]
    %v528 = vld [vmem:[%s11 + $0x2d8] sm:$0xff]
    %v529 = vld [vmem:[%s11 + $0x2e0] sm:$0xff]
    %v530 = vld [vmem:[%s11 + $0x2e8] sm:$0xff]
    %v531 = vld [vmem:[%s11 + $0x2f0] sm:$0xff]
    %v532 = vld [vmem:[%s11 + $0x2f8] sm:$0xff]
    %v533 = vld [vmem:[%s11 + $0x300] sm:$0xff]
    %v534 = vld [vmem:[%s11 + $0x308] sm:$0xff]
    %v535 = vld [vmem:[%s11 + $0x310] sm:$0xff]
    %v536 = vld [vmem:[%s11 + $0x318] sm:$0xff]
    %v537 = vld [vmem:[%s11 + $0x320] sm:$0xff]
    %v538 = vld [vmem:[%s11 + $0x328] sm:$0xff]
    %v539 = vld [vmem:[%s11 + $0x330] sm:$0xff]
    %v540 = vld [vmem:[%s11 + $0x338] sm:$0xff]
    %v541 = vld [vmem:[%s11 + $0x340] sm:$0xff]
    %v542 = vld [vmem:[%s11 + $0x348] sm:$0xff]
    %v543 = vld [vmem:[%s11 + $0x350] sm:$0xff]
    %v544 = vld [vmem:[%s11 + $0x358] sm:$0xff]
    %v545 = vld [vmem:[%s11 + $0x360] sm:$0xff]
    %v546 = vld [vmem:[%s11 + $0x368] sm:$0xff]
    %v547 = vld [vmem:[%s11 + $0x370] sm:$0xff]
    %v548 = vld [vmem:[%s11 + $0x378] sm:$0xff]
    %v549 = vld [vmem:[%s12] sm:$0x7f]
    %v551 = vperm.slane %v549, 0
    %v552 = vperm.slane %v549, 1
    %v553 = vperm.slane %v549, 2
    %v554 = vperm.slane %v549, 3
    %v555 = vperm.slane %v549, 4
    %v556 = vperm.slane %v549, 5
    %v557 = vperm.slane %v549, 6
    %565 = vmatpush.msra.mxu0 %v542
    %566 = vmatpush.msra.mxu0 %v535
    %567 = vmatpush.msra.mxu0 %v528
    %568 = vmatpush.msra.mxu0 %v521
    %569 = vmatpush.msra.mxu0 %v514
    %570 = vmatpush.msra.mxu0 %v507
    %571 = vmatpush.msra.mxu0 %v500
    %572 = vmatpush.msra.mxu0 %v493
    %573 = vmatpush.msra.mxu0 %v486
    %574 = vmatpush.msra.mxu0 %v479
    %575 = vmatpush.msra.mxu0 %v472
    %576 = vmatpush.msra.mxu0 %v465
    %577 = vmatpush.msra.mxu0 %v458
    %578 = vmatpush.msra.mxu0 %v451
    %579 = vmatpush.msra.mxu0 %v444
    %580 = vmatpush.msra.mxu0 %v437
    %581 = vmatmul.f32.gmra.mxu0 %v436
    %v582 = vpop.f32.mrf.mxu0
    %v583 = vadd.f32 %v551, %v582
    %584 = vdwg.mxu0
    %585 = vmatpush.msra.mxu0 %v543
    %586 = vmatpush.msra.mxu0 %v536
    %587 = vmatpush.msra.mxu0 %v529
    %588 = vmatpush.msra.mxu0 %v522
    %589 = vmatpush.msra.mxu0 %v515
    %590 = vmatpush.msra.mxu0 %v508
    %591 = vmatpush.msra.mxu0 %v501
    %592 = vmatpush.msra.mxu0 %v494
    %593 = vmatpush.msra.mxu0 %v487
    %594 = vmatpush.msra.mxu0 %v480
    %595 = vmatpush.msra.mxu0 %v473
    %596 = vmatpush.msra.mxu0 %v466
    %597 = vmatpush.msra.mxu0 %v459
    %598 = vmatpush.msra.mxu0 %v452
    %599 = vmatpush.msra.mxu0 %v445
    %600 = vmatpush.msra.mxu0 %v438
    %601 = vmatmul.f32.gmra.mxu0 %v436
    %v602 = vpop.f32.mrf.mxu0
    %v603 = vadd.f32 %v552, %v602
    %604 = vdwg.mxu0
    %605 = vmatpush.msra.mxu0 %v544
    %606 = vmatpush.msra.mxu0 %v537
    %607 = vmatpush.msra.mxu0 %v530
    %608 = vmatpush.msra.mxu0 %v523
    %609 = vmatpush.msra.mxu0 %v516
    %610 = vmatpush.msra.mxu0 %v509
    %611 = vmatpush.msra.mxu0 %v502
    %612 = vmatpush.msra.mxu0 %v495
    %613 = vmatpush.msra.mxu0 %v488
    %614 = vmatpush.msra.mxu0 %v481
    %615 = vmatpush.msra.mxu0 %v474
    %616 = vmatpush.msra.mxu0 %v467
    %617 = vmatpush.msra.mxu0 %v460
    %618 = vmatpush.msra.mxu0 %v453
    %619 = vmatpush.msra.mxu0 %v446
    %620 = vmatpush.msra.mxu0 %v439
    %621 = vmatmul.f32.gmra.mxu0 %v436
    %v622 = vpop.f32.mrf.mxu0
    %v623 = vadd.f32 %v553, %v622
    %624 = vdwg.mxu0
    %625 = vmatpush.msra.mxu0 %v545
    %626 = vmatpush.msra.mxu0 %v538
    %627 = vmatpush.msra.mxu0 %v531
    %628 = vmatpush.msra.mxu0 %v524
    %629 = vmatpush.msra.mxu0 %v517
    %630 = vmatpush.msra.mxu0 %v510
    %631 = vmatpush.msra.mxu0 %v503
    %632 = vmatpush.msra.mxu0 %v496
    %633 = vmatpush.msra.mxu0 %v489
    %634 = vmatpush.msra.mxu0 %v482
    %635 = vmatpush.msra.mxu0 %v475
    %636 = vmatpush.msra.mxu0 %v468
    %637 = vmatpush.msra.mxu0 %v461
    %638 = vmatpush.msra.mxu0 %v454
    %639 = vmatpush.msra.mxu0 %v447
    %640 = vmatpush.msra.mxu0 %v440
    %641 = vmatmul.f32.gmra.mxu0 %v436
    %v642 = vpop.f32.mrf.mxu0
    %v643 = vadd.f32 %v554, %v642
    %644 = vdwg.mxu0
    %645 = vmatpush.msra.mxu0 %v546
    %646 = vmatpush.msra.mxu0 %v539
    %647 = vmatpush.msra.mxu0 %v532
    %648 = vmatpush.msra.mxu0 %v525
    %649 = vmatpush.msra.mxu0 %v518
    %650 = vmatpush.msra.mxu0 %v511
    %651 = vmatpush.msra.mxu0 %v504
    %652 = vmatpush.msra.mxu0 %v497
    %653 = vmatpush.msra.mxu0 %v490
    %654 = vmatpush.msra.mxu0 %v483
    %655 = vmatpush.msra.mxu0 %v476
    %656 = vmatpush.msra.mxu0 %v469
    %657 = vmatpush.msra.mxu0 %v462
    %658 = vmatpush.msra.mxu0 %v455
    %659 = vmatpush.msra.mxu0 %v448
    %660 = vmatpush.msra.mxu0 %v441
    %661 = vmatmul.f32.gmra.mxu0 %v436
    %v662 = vpop.f32.mrf.mxu0
    %v663 = vadd.f32 %v555, %v662
    %664 = vdwg.mxu0
    %665 = vmatpush.msra.mxu0 %v547
    %666 = vmatpush.msra.mxu0 %v540
    %667 = vmatpush.msra.mxu0 %v533
    %668 = vmatpush.msra.mxu0 %v526
    %669 = vmatpush.msra.mxu0 %v519
    %670 = vmatpush.msra.mxu0 %v512
    %671 = vmatpush.msra.mxu0 %v505
    %672 = vmatpush.msra.mxu0 %v498
    %673 = vmatpush.msra.mxu0 %v491
    %674 = vmatpush.msra.mxu0 %v484
    %675 = vmatpush.msra.mxu0 %v477
    %676 = vmatpush.msra.mxu0 %v470
    %677 = vmatpush.msra.mxu0 %v463
    %678 = vmatpush.msra.mxu0 %v456
    %679 = vmatpush.msra.mxu0 %v449
    %680 = vmatpush.msra.mxu0 %v442
    %681 = vmatmul.f32.gmra.mxu0 %v436
    %v682 = vpop.f32.mrf.mxu0
    %v683 = vadd.f32 %v556, %v682
    %684 = vdwg.mxu0
    %685 = vmatpush.msra.mxu0 %v548
    %686 = vmatpush.msra.mxu0 %v541
    %687 = vmatpush.msra.mxu0 %v534
    %688 = vmatpush.msra.mxu0 %v527
    %689 = vmatpush.msra.mxu0 %v520
    %690 = vmatpush.msra.mxu0 %v513
    %691 = vmatpush.msra.mxu0 %v506
    %692 = vmatpush.msra.mxu0 %v499
    %693 = vmatpush.msra.mxu0 %v492
    %694 = vmatpush.msra.mxu0 %v485
    %695 = vmatpush.msra.mxu0 %v478
    %696 = vmatpush.msra.mxu0 %v471
    %697 = vmatpush.msra.mxu0 %v464
    %698 = vmatpush.msra.mxu0 %v457
    %699 = vmatpush.msra.mxu0 %v450
    %700 = vmatpush.msra.mxu0 %v443
    %701 = vmatmul.f32.gmra.mxu0 %v436
    %v702 = vpop.f32.mrf.mxu0
    %v703 = vadd.f32 %v557, %v702
    %704 = vdwg.mxu0
    %v705 = vmul.f32 %v583, 0.5
    %v706 = vmul.f32 %v603, 0.5
    %v707 = vmul.f32 %v623, 0.5
    %v708 = vmul.f32 %v643, 0.5
    %v709 = vmul.f32 %v663, 0.5
    %v710 = vmul.f32 %v683, 0.5
    %v711 = vmul.f32 %v703, 0.5
    %v712 = vtanh.pop %v705
    %v713 = vtanh.pop %v706
    %v714 = vtanh.pop %v707
    %v715 = vtanh.pop %v708
    %v716 = vtanh.pop %v709
    %v717 = vtanh.pop %v710
    %v718 = vtanh.pop %v711
    %v719 = vadd.f32 %v712, 1.0
    %v720 = vadd.f32 %v713, 1.0
    %v721 = vadd.f32 %v714, 1.0
    %v722 = vadd.f32 %v715, 1.0
    %v723 = vadd.f32 %v716, 1.0
    %v724 = vadd.f32 %v717, 1.0
    %v725 = vadd.f32 %v718, 1.0
    %v726 = vmul.f32 %v719, 0.5
    %v727 = vmul.f32 %v720, 0.5
    %v728 = vmul.f32 %v721, 0.5
    %v729 = vmul.f32 %v722, 0.5
    %v730 = vmul.f32 %v723, 0.5
    %v731 = vmul.f32 %v724, 0.5
    %v732 = vmul.f32 %v725, 0.5
    %733 = vst [vmem:[#allocation2] sm:$0xff] %v726
    %734 = vst [vmem:[#allocation2 + $0x8] sm:$0xff] %v727
    %735 = vst [vmem:[#allocation2 + $0x10] sm:$0xff] %v728
    %736 = vst [vmem:[#allocation2 + $0x18] sm:$0xff] %v729
    %737 = vst [vmem:[#allocation2 + $0x20] sm:$0xff] %v730
    %738 = vst [vmem:[#allocation2 + $0x28] sm:$0xff] %v731
    %739 = vst.msk [vmem:[#allocation2 + $0x30] sm:$0xff] %vm156, %v732
    // Predicated region
    $region54: #{tpu_custom_call.1} parent=1 // pred_check
      _
    $region55: #{tpu_custom_call.1} parent=1 // pred_check_branch
      %741 = sbr.rel (0) target = $region57
    $region56: #{tpu_custom_call.1} parent=1 // pred_region
      _
    $region57: #{tpu_custom_call.1} parent=1 // pred_fallthru
      _
    // Predicated region
    $region58: #{tpu_custom_call.1} parent=1 // pred_check
      _
    $region59: #{tpu_custom_call.1} parent=1 // pred_check_branch
      %743 = sbr.rel (0) target = $region61
    $region60: #{tpu_custom_call.1} parent=1 // pred_region
      %745 = vsyncadd [#allocation3], 0
      %s747 = sshll.u32 [#allocation2], 4
      %s748 = int_to_ptr.vmem [resolvable:$true] %s747
      %s749 = sshll.u32 %s14, 4
      %s750 = int_to_ptr.hbm [resolvable:$true] %s749
      %752 = dma.vmem_to_hbm [thread:$0]  %s748, 896, %s750, [#allocation3]
    $region61: #{tpu_custom_call.1} parent=1 // pred_fallthru
      _
    // Predicated region
    $region62: #{tpu_custom_call.1} parent=1 // pred_check
      _
    $region63: #{tpu_custom_call.1} parent=1 // pred_check_branch
      %754 = sbr.rel (0) target = $region65
    $region64: #{tpu_custom_call.1} parent=1 // pred_region
      _
    $region65: #{tpu_custom_call.1} parent=1 // pred_fallthru
      _
    // Predicated region
    $region66: #{tpu_custom_call.1} parent=1 // pred_check
      _
    $region67: #{tpu_custom_call.1} parent=1 // pred_check_branch
      %756 = sbr.rel (0) target = $region69
    $region68: #{tpu_custom_call.1} parent=1 // pred_region
      %758 = dma.done [#allocation3], 896
    $region69: #{tpu_custom_call.1} parent=1 // pred_fallthru
      _
    %759 = vsyncpa [#allocation3], 1

</llo_original>
